<compile_context>
chip_gen: v5e
topology: v5e:2x2
jax: 0.10.0
libtpu: 0.0.40
codegen_flags: <defaults>
</compile_context>

<pallas_src>
import functools

import jax
import jax.numpy as jnp
from jax.experimental import pallas as pl
from jax.experimental.pallas import tpu as pltpu


def _round_up(x, m):
    return (x + m - 1) // m * m


def _cdiv(a, b):
    return -(-a // b)


def _vmem_capacity_bytes():
    """Physical VMEM of the local TPU; conservative fallback if unavailable."""
    try:
        return int(pltpu.get_tpu_info().vmem_capacity_bytes)
    except Exception:  # pragma: no cover - env without query support
        return 64 << 20  # v7x per-TC size: the most restrictive generation


def _vmem_estimate(bb, bq, t_in, h, in_bytes, align_bytes):
    """Rough per-step VMEM working set (double-buffered I/O + f32 temps)."""
    ctx = 2 * bb * t_in * h * in_bytes            # context block (resident across qi)
    outq = 2 * bb * bq * h * in_bytes             # decoder-output block
    y = 2 * bb * bq * h * in_bytes                # attended-output block
    align = 2 * bb * bq * t_in * align_bytes      # align output block
    wgt = 2 * (2 * h) * h * in_bytes + 2 * h * 4  # stacked weight + bias
    f32 = 3 * bb * bq * t_in * 4 + 2 * bb * bq * h * 4  # score/e/align + aligned/y
    return ctx + outq + y + align + wgt + f32


def _pick_tiles(B, T_out, T_in, H, in_bytes, align_bytes, budget,
                max_bb=8, max_bq=256):
    """Largest (bb, bq) that fits the VMEM budget; shrink bq first, then bb."""
    bb = min(max_bb, B)
    bq = T_out if T_out <= max_bq else max_bq          # full extent if small
    while _vmem_estimate(bb, bq, T_in, H, in_bytes, align_bytes) > budget:
        if bq > 8:
            bq = max(8, _round_up(bq // 2, 8))          # tiled bq: multiple of 8
        elif bb > 1:
            bb = (bb + 1) // 2
        else:
            break                                       # smallest tiles; may spill
    return bb, bq


def _ensure_two_steps(bb, bq, B, T_out):
    """Guarantee >= 2 grid steps on a parallel axis (v7x has 2 TensorCores)."""
    if _cdiv(B, bb) * _cdiv(T_out, bq) >= 2:
        return bb, bq
    if B >= 2:
        return (B + 1) // 2, bq
    if T_out > 8:
        new_bq = max(8, _round_up((T_out + 1) // 2, 8))
        if _cdiv(T_out, new_bq) >= 2:
            return bb, new_bq
    return bb, bq


def _attn_kernel(out_ref, ctx_ref, w_ref, b_ref, y_ref, align_ref, *,
                 h, mxu_dtype=None):
    # out_ref:   (bb, bq,   H)   decoder outputs (query side), native dtype
    # ctx_ref:   (bb, T_in, H)   encoder context (key/value side), native dtype
    # w_ref:     (2H, H)         stacked [Wa^T ; Wo^T]  (== W.T)
    # b_ref:     (1, H)          f32 bias
    # y_ref:     (bb, bq,   H)
    # align_ref: (bb, bq, T_in)
    o = out_ref[...]
    c = ctx_ref[...]
    om = o.astype(mxu_dtype) if mxu_dtype is not None else o
    cm = c.astype(mxu_dtype) if mxu_dtype is not None else c

    # score = output @ context^T.  Both operands contract their minor (lane)
    # dim -- same pattern as the flash-attention q@k^T, handled natively by
    # the MXU (no materialized transpose).  f32 accumulation.
    score = jnp.einsum("bqh,bkh->bqk", om, cm,
                       preferred_element_type=jnp.float32)

    # Numerically-stable softmax over T_in (f32).  T_in is never padded, so
    # no key mask is needed.
    m = jnp.max(score, axis=-1, keepdims=True)
    e = jnp.exp(score - m)
    s = jnp.sum(e, axis=-1, keepdims=True)
    # EUP approximate reciprocal + one Newton refinement step (~f32 accurate).
    r = pl.reciprocal(s, approx=True)
    r = r * (2.0 - s * r)
    align = e * r                                        # (bb, bq, T_in) f32

    # aligned_context = align @ context, f32 accumulation on the MXU.
    aligned = jnp.einsum("bqk,bkh->bqh", align.astype(cm.dtype), cm,
                         preferred_element_type=jnp.float32)

    # tanh(Linear(cat([aligned, output]))) == tanh(aligned@Wa^T + output@Wo^T + b)
    wa = w_ref[:h, :]
    wo = w_ref[h:, :]
    y = (jnp.einsum("bqh,hd->bqd", aligned.astype(w_ref.dtype), wa,
                    preferred_element_type=jnp.float32)
         + jnp.einsum("bqh,hd->bqd", o, wo,
                      preferred_element_type=jnp.float32)
         + b_ref[...])
    y_ref[...] = jnp.tanh(y).astype(y_ref.dtype)
    align_ref[...] = align.astype(align_ref.dtype)


def attn_forward(output, context, W, b, *, max_block_q=256, max_block_b=8,
                 align_dtype=None, mxu_dtype=None):
    """Luong global attention forward.

    output:  (B, T_out, H)
    context: (B, T_in,  H)
    W:       (H, 2H)   nn.Linear(2H -> H) weight
    b:       (H,)      nn.Linear bias
    align_dtype: dtype for the align output (default: input dtype).
    mxu_dtype:   optional cast for the attention matmul operands (e.g. bf16
                 on v5e for f32 inputs); accumulation stays f32.
    """
    B, T_out, H = output.shape
    _, T_in, _ = context.shape
    dt = output.dtype
    align_dt = jnp.dtype(align_dtype) if align_dtype is not None else jnp.dtype(dt)
    in_bytes = jnp.dtype(dt).itemsize
    align_bytes = align_dt.itemsize

    # VMEM-budget- and generation-aware tile selection.
    vmem_cap = _vmem_capacity_bytes()
    vmem_limit = min(vmem_cap * 3 // 4, 100 << 20)
    tile_budget = vmem_limit * 4 // 5

    bb, bq = _pick_tiles(B, T_out, T_in, H, in_bytes, align_bytes, tile_budget,
                         max_bb=max_block_b, max_bq=max_block_q)
    bb, bq = _ensure_two_steps(bb, bq, B, T_out)

    Bp = _round_up(B, bb)
    Tqp = _round_up(T_out, bq)

    # Pad only when the tile does not divide the true dim (H / T_in never pad:
    # full-extent blocks are legal and keep the align HBM write at its true size).
    out_p = output
    if Bp != B or Tqp != T_out:
        out_p = jnp.zeros((Bp, Tqp, H), dt).at[:B, :T_out, :].set(output)
    ctx_p = context
    if Bp != B:
        ctx_p = jnp.zeros((Bp, T_in, H), dt).at[:B, :, :].set(context)

    # Stacked weight (2H, H) == W.T: rows [0:H) act on aligned_context,
    # rows [H:2H) on output.  Bias kept in f32 for the f32 accumulator.
    w = W.T.astype(dt)
    b2 = b.astype(jnp.float32).reshape(1, H)

    kernel = functools.partial(_attn_kernel, h=H, mxu_dtype=mxu_dtype)

    # Grid ordering matters: axis 1 (qi) iterates fastest, so the large
    # context block -- whose index_map ignores qi -- stays resident in VMEM
    # across the whole qi sweep and is DMA'd once per batch block.
    grid = (Bp // bb, Tqp // bq)

    y_p, align_p = pl.pallas_call(
        kernel,
        out_shape=(
            jax.ShapeDtypeStruct((Bp, Tqp, H), dt),
            jax.ShapeDtypeStruct((Bp, Tqp, T_in), align_dt),
        ),
        grid_spec=pltpu.PrefetchScalarGridSpec(
            num_scalar_prefetch=0,
            grid=grid,
            in_specs=[
                pl.BlockSpec((bb, bq, H), lambda bi, qi: (bi, qi, 0)),
                pl.BlockSpec((bb, T_in, H), lambda bi, qi: (bi, 0, 0)),
                pl.BlockSpec((2 * H, H), lambda bi, qi: (0, 0)),
                pl.BlockSpec((1, H), lambda bi, qi: (0, 0)),
            ],
            out_specs=[
                pl.BlockSpec((bb, bq, H), lambda bi, qi: (bi, qi, 0)),
                pl.BlockSpec((bb, bq, T_in), lambda bi, qi: (bi, qi, 0)),
            ],
        ),
        compiler_params=pltpu.CompilerParams(
            dimension_semantics=("parallel", "parallel"),
            vmem_limit_bytes=int(vmem_limit)),
    )(out_p, ctx_p, w, b2)

    if Bp == B and Tqp == T_out:
        return y_p, align_p
    return y_p[:B, :T_out, :], align_p[:B, :T_out, :]


def _reference(output, context, W, b):
    score = jnp.einsum("bqh,bkh->bqk", output, context)
    align = jax.nn.softmax(score, axis=-1)
    aligned = jnp.einsum("bqk,bkh->bqh", align, context)
    combined = jnp.concatenate([aligned, output], axis=-1)
    y = jnp.tanh(combined @ W.T + b)
    return y, align


if __name__ == "__main__":
    B, T_out, T_in, H = 2, 8, 8, 32

    key = jax.random.PRNGKey(0)
    k1, k2, k3, k4 = jax.random.split(key, 4)
    output = jax.random.normal(k1, (B, T_out, H), dtype=jnp.float32)
    context = jax.random.normal(k2, (B, T_in, H), dtype=jnp.float32)
    # nn.Linear(2H, H): weight (H, 2H), bias (H,)
    W = jax.random.normal(k3, (H, 2 * H), dtype=jnp.float32) * 0.1
    b = jax.random.normal(k4, (H,), dtype=jnp.float32) * 0.1

    y, align = attn_forward(output, context, W, b)
    jax.block_until_ready((y, align))

    y_ref, align_ref = _reference(output, context, W, b)
    assert y.shape == y_ref.shape and align.shape == align_ref.shape
    assert jnp.allclose(y, y_ref, atol=1e-4, rtol=1e-4), \
        float(jnp.max(jnp.abs(y - y_ref)))
    assert jnp.allclose(align, align_ref, atol=1e-4, rtol=1e-4), \
        float(jnp.max(jnp.abs(align - align_ref)))

    print("KERNEL_OK")
</pallas_src>

<mosaic_0001>
module attributes {stable_mosaic.version = 11 : i64} {
  func.func @_attn_kernel(%arg0: i32, %arg1: i32, %arg2: memref<1x8x32xf32, #tpu.memory_space<vmem>>, %arg3: memref<1x8x32xf32, #tpu.memory_space<vmem>>, %arg4: memref<64x32xf32, #tpu.memory_space<vmem>>, %arg5: memref<1x32xf32, #tpu.memory_space<vmem>>, %arg6: memref<1x8x32xf32, #tpu.memory_space<vmem>>, %arg7: memref<1x8x8xf32, #tpu.memory_space<vmem>>) attributes {dimension_semantics = [#tpu.dimension_semantics<parallel>, #tpu.dimension_semantics<parallel>], iteration_bounds = array<i64: 2, 1>, scalar_prefetch = 0 : i64, scratch_operands = 0 : i64, tpu.core_type = #tpu.core_type<tc>, window_params = [{transform_indices = @transform_0, window_bounds = array<i64: 1, 8, 32>}, {transform_indices = @transform_1, window_bounds = array<i64: 1, 8, 32>}, {pipeline_mode = #tpu.pipeline_mode<synchronous>, transform_indices = @transform_2, window_bounds = array<i64: 64, 32>}, {pipeline_mode = #tpu.pipeline_mode<synchronous>, transform_indices = @transform_3, window_bounds = array<i64: 1, 32>}, {transform_indices = @transform_4, window_bounds = array<i64: 1, 8, 32>}, {transform_indices = @transform_5, window_bounds = array<i64: 1, 8, 8>}]} {
    %c0 = arith.constant 0 : index
    %c0_0 = arith.constant 0 : index
    %c0_1 = arith.constant 0 : index
    %0 = vector.load %arg2[%c0, %c0_0, %c0_1] : memref<1x8x32xf32, #tpu.memory_space<vmem>>, vector<1x8x32xf32>
    %c0_2 = arith.constant 0 : index
    %c0_3 = arith.constant 0 : index
    %c0_4 = arith.constant 0 : index
    %1 = vector.load %arg3[%c0_2, %c0_3, %c0_4] : memref<1x8x32xf32, #tpu.memory_space<vmem>>, vector<1x8x32xf32>
    "tpu.trace_start"() <{level = 10 : i32, message = "bqh,bkh->bqk"}> : () -> ()
    %cst = arith.constant dense<0.000000e+00> : vector<1x8x8xf32>
    %2 = tpu.matmul %0, %1, %cst {dimension_numbers = #tpu.dot_dimension_numbers<[2], [2], [1], [1], [0, 0, 0, 1, 1, 1], [0], [0]>} : vector<1x8x32xf32>, vector<1x8x32xf32>, vector<1x8x8xf32> -> vector<1x8x8xf32>
    "tpu.trace_stop"() : () -> ()
    %cst_5 = arith.constant dense<0xFF800000> : vector<1x8xf32>
    %3 = vector.multi_reduction <maximumf>, %2, %cst_5 [2] : vector<1x8x8xf32> to vector<1x8xf32>
    %4 = vector.shape_cast %3 : vector<1x8xf32> to vector<1x8x1xf32>
    %5 = vector.broadcast %4 : vector<1x8x1xf32> to vector<1x8x8xf32>
    %6 = arith.subf %2, %5 : vector<1x8x8xf32>
    %7 = math.exp %6 : vector<1x8x8xf32>
    %cst_6 = arith.constant dense<0.000000e+00> : vector<1x8xf32>
    %8 = vector.multi_reduction <add>, %7, %cst_6 [2] : vector<1x8x8xf32> to vector<1x8xf32>
    %9 = vector.shape_cast %8 : vector<1x8xf32> to vector<1x8x1xf32>
    %10 = tpu.reciprocal %9 {approx = true} : vector<1x8x1xf32> -> vector<1x8x1xf32>
    %11 = arith.mulf %9, %10 : vector<1x8x1xf32>
    %cst_7 = arith.constant 2.000000e+00 : f32
    %12 = vector.broadcast %cst_7 : f32 to vector<1x8x1xf32>
    %13 = arith.subf %12, %11 : vector<1x8x1xf32>
    %14 = arith.mulf %10, %13 : vector<1x8x1xf32>
    %15 = vector.broadcast %14 : vector<1x8x1xf32> to vector<1x8x8xf32>
    %16 = arith.mulf %7, %15 : vector<1x8x8xf32>
    "tpu.trace_start"() <{level = 10 : i32, message = "bqk,bkh->bqh"}> : () -> ()
    %cst_8 = arith.constant dense<0.000000e+00> : vector<1x8x32xf32>
    %17 = tpu.matmul %16, %1, %cst_8 {dimension_numbers = #tpu.dot_dimension_numbers<[2], [1], [1], [2], [0, 0, 0, 1, 1, 2], [0], [0]>} : vector<1x8x8xf32>, vector<1x8x32xf32>, vector<1x8x32xf32> -> vector<1x8x32xf32>
    "tpu.trace_stop"() : () -> ()
    %c0_9 = arith.constant 0 : index
    %c0_10 = arith.constant 0 : index
    %18 = vector.load %arg4[%c0_9, %c0_10] : memref<64x32xf32, #tpu.memory_space<vmem>>, vector<32x32xf32>
    %c32 = arith.constant 32 : index
    %c0_11 = arith.constant 0 : index
    %19 = vector.load %arg4[%c32, %c0_11] : memref<64x32xf32, #tpu.memory_space<vmem>>, vector<32x32xf32>
    "tpu.trace_start"() <{level = 10 : i32, message = "bqh,hd->bqd"}> : () -> ()
    %cst_12 = arith.constant dense<0.000000e+00> : vector<1x8x32xf32>
    %20 = tpu.matmul %17, %18, %cst_12 {dimension_numbers = #tpu.dot_dimension_numbers<[2], [0], [0, 1], [1], [0, 0, 0, 1, 1, 1], [], []>} : vector<1x8x32xf32>, vector<32x32xf32>, vector<1x8x32xf32> -> vector<1x8x32xf32>
    %cst_13 = arith.constant dense<0.000000e+00> : vector<1x8x32xf32>
    %21 = tpu.matmul %0, %19, %cst_13 {dimension_numbers = #tpu.dot_dimension_numbers<[2], [0], [0, 1], [1], [0, 0, 0, 1, 1, 1], [], []>} : vector<1x8x32xf32>, vector<32x32xf32>, vector<1x8x32xf32> -> vector<1x8x32xf32>
    "tpu.trace_stop"() : () -> ()
    %22 = arith.addf %20, %21 : vector<1x8x32xf32>
    %c0_14 = arith.constant 0 : index
    %c0_15 = arith.constant 0 : index
    %23 = vector.load %arg5[%c0_14, %c0_15] : memref<1x32xf32, #tpu.memory_space<vmem>>, vector<1x32xf32>
    %24 = vector.shape_cast %23 : vector<1x32xf32> to vector<1x1x32xf32>
    %25 = vector.broadcast %24 : vector<1x1x32xf32> to vector<1x8x32xf32>
    %26 = arith.addf %22, %25 : vector<1x8x32xf32>
    %27 = math.tanh %26 : vector<1x8x32xf32>
    %c0_16 = arith.constant 0 : index
    %c0_17 = arith.constant 0 : index
    %c0_18 = arith.constant 0 : index
    %28 = vector.load %arg6[%c0_16, %c0_17, %c0_18] : memref<1x8x32xf32, #tpu.memory_space<vmem>>, vector<1x8x32xf32>
    tpu.vector_store %arg6[%c0_16, %c0_17, %c0_18], %27 {strides = array<i32>} : memref<1x8x32xf32, #tpu.memory_space<vmem>>, vector<1x8x32xf32>,
    %c0_19 = arith.constant 0 : index
    %c0_20 = arith.constant 0 : index
    %c0_21 = arith.constant 0 : index
    %29 = vector.load %arg7[%c0_19, %c0_20, %c0_21] : memref<1x8x8xf32, #tpu.memory_space<vmem>>, vector<1x8x8xf32>
    tpu.vector_store %arg7[%c0_19, %c0_20, %c0_21], %16 {strides = array<i32>} : memref<1x8x8xf32, #tpu.memory_space<vmem>>, vector<1x8x8xf32>,
    return
  }
  func.func @transform_0(%arg0: i32, %arg1: i32) -> (i32, i32, i32) {
    %c0_i32 = arith.constant 0 : i32
    %c0_i32_0 = arith.constant 0 : i32
    return %arg0, %arg1, %c0_i32 : i32, i32, i32
  }
  func.func @transform_1(%arg0: i32, %arg1: i32) -> (i32, i32, i32) {
    %c0_i32 = arith.constant 0 : i32
    %c0_i32_0 = arith.constant 0 : i32
    %c0_i32_1 = arith.constant 0 : i32
    return %arg0, %c0_i32, %c0_i32_0 : i32, i32, i32
  }
  func.func @transform_2(%arg0: i32, %arg1: i32) -> (i32, i32) {
    %c0_i32 = arith.constant 0 : i32
    %c0_i32_0 = arith.constant 0 : i32
    %c0_i32_1 = arith.constant 0 : i32
    return %c0_i32, %c0_i32_0 : i32, i32
  }
  func.func @transform_3(%arg0: i32, %arg1: i32) -> (i32, i32) {
    %c0_i32 = arith.constant 0 : i32
    %c0_i32_0 = arith.constant 0 : i32
    %c0_i32_1 = arith.constant 0 : i32
    return %c0_i32, %c0_i32_0 : i32, i32
  }
  func.func @transform_4(%arg0: i32, %arg1: i32) -> (i32, i32, i32) {
    %c0_i32 = arith.constant 0 : i32
    %c0_i32_0 = arith.constant 0 : i32
    return %arg0, %arg1, %c0_i32 : i32, i32, i32
  }
  func.func @transform_5(%arg0: i32, %arg1: i32) -> (i32, i32, i32) {
    %c0_i32 = arith.constant 0 : i32
    %c0_i32_0 = arith.constant 0 : i32
    return %arg0, %arg1, %c0_i32 : i32, i32, i32
  }
}

</mosaic_0001>

<llo_original>
// kernel: tpu_custom_call.1
$region0: #{tpu_custom_call.1}
  #allocation0 [shape = 'u32[]', space=smem, size = 0x4, offset = 0x4, fixed_abs, tag = 'smem constant byte address 0x4 - core index']
  #allocation1 [shape = 'u32[72,128]{1,0:T(1,128)}', space=vmem, size = 0x9000, scoped, tag = 'internal scratch']
  %s0 = inlined_call_operand.vmem [shape: f32[2,8,32], index: 0, kind: input, shape index: {}]
  %s1 = inlined_call_operand.vmem [shape: f32[2,8,32], index: 1, kind: input, shape index: {}]
  %s2 = inlined_call_operand.vmem [shape: f32[64,32], index: 2, kind: input, shape index: {}]
  %s3 = inlined_call_operand.vmem [shape: f32[1,32], index: 3, kind: input, shape index: {}]
  %s4 = inlined_call_operand.hbm [shape: f32[2,8,32], index: 4, kind: output, shape index: {0}]
  %s5 = inlined_call_operand.hbm [shape: f32[2,8,8], index: 5, kind: output, shape index: {1}]
  %6 = xla_tuple %s4, %s5
  %s7 = sld [smem:[#allocation0]]
  $region57: #{tpu_custom_call.1} parent=0
    _
  %s9 = ssub.s32 1, %s7
  %s10 = scalar_select 0, %s9, %s7
  $region1: #{tpu_custom_call.1} parent=0
    #allocation2 [shape = 'u8[8192]{0}', space=vmem, size = 0x2000, scoped, tag = 'output window, operand 0']
    #allocation3 [shape = 's32[2]{0}', space=sflag, size = 0x8, scoped, tag = 'scoped memory for tpu_custom_call.1']
    #allocation4 [shape = 'u8[8192]{0}', space=vmem, size = 0x2000, scoped, tag = 'output window, operand 1']
    #allocation5 [shape = 's32[2]{0}', space=sflag, size = 0x8, scoped, tag = 'scoped memory for tpu_custom_call.1']
    %11 = vsyncpa [#allocation3], 0
    %s12 = scalar_lea.sflag [#allocation3], 1
    %13 = vsyncpa %s12, 0
    %14 = vsyncpa [#allocation5], 0
    %s15 = scalar_lea.sflag [#allocation5], 1
    %16 = vsyncpa %s15, 0
    loop: start=0, step=1, limit=4
    $region2: #{tpu_custom_call.1} parent=1 // loop_pre_header
      _
    $region3: #{tpu_custom_call.1} parent=1 // loop_header
      %s18 = sphi 0, %s22
      %p19 = scmp.ge.s32.totalorder %s18, 4
      %s25 = sphi 0, %s37
      %s26 = sphi 0, %s33
      %s27 = sphi 0, %s25
      %s28 = sphi 0, %s26
      %s29 = sphi 0, %s27
      %s30 = sphi 0, %s28
      %s42 = sphi 0, %s44
      %s45 = sphi 0, %s42
      %s46 = sphi 0, %s45
      %s62 = sphi 0, %s46
      %s68 = sphi 0, %s70
      %s71 = sphi 0, %s68
      %s72 = sphi 0, %s71
      %s88 = sphi 0, %s72
      %s92 = sphi 0, %s92
      %s94 = sphi 0, %s92
      %s95 = sphi 0, %s94
      %s109 = sphi 0, %s95
      %s113 = sphi 0, %s113
      %s115 = sphi 0, %s113
      %s116 = sphi 0, %s115
      %s130 = sphi 0, %s116
      %s138 = sphi 0, %s140
      %s141 = sphi 0, %s138
      %s142 = sphi 0, %s141
      %s158 = sphi 0, %s142
      %s166 = sphi 0, %s168
      %s169 = sphi 0, %s166
      %s170 = sphi 0, %s169
      %s186 = sphi 0, %s170
    $region4: #{tpu_custom_call.1} parent=1 // loop_header_branch
      %21 = sbr.rel (%p19) target = $region8
    $region5: #{tpu_custom_call.1} parent=1 // loop_body
      %s23 = ssub.s32 %s18, 1
      %s24 = ssub.s32 %s18, 2
      %s31 = sadd.s32 1, %s26
      %p32 = scmp.ge.s32.totalorder %s31, 1
      %s33 = scalar_select %p32, 0, %s31
      %s34 = sadd.s32 1, %s25
      %s35 = scalar_select %p32, %s34, %s25
      %p36 = scmp.ge.s32.totalorder %s35, 2
      %s37 = scalar_select %p36, 0, %s35
      %s38 = ssub.s32 %s25, %s37
      %s39 = ssub.s32 %s26, %s33
      %s40 = sor.u32 %s38, %s39
      %p41 = scmp.eq.s32.totalorder %s40, 0
      %s43 = sadd.s32 %s42, 1
      %s44 = scalar_select %p41, %s42, %s43
      %p47 = pneg %p41
      %p48 = scmp.eq.s32.totalorder %s18, 1
      %p49 = por %p47, %p48
      %p50 = scmp.ne.s32.totalorder %s42, %s45
      %p51 = scmp.eq.s32.totalorder %s18, 0
      %p52 = por %p50, %p51
      %p53 = scmp.ne.s32.totalorder %s42, %s45
      %p54 = scmp.eq.s32.totalorder %s23, 1
      %p55 = por %p53, %p54
      %p56 = scmp.ne.s32.totalorder %s45, %s46
      %p57 = scmp.eq.s32.totalorder %s23, 0
      %p58 = por %p56, %p57
      %p59 = scmp.ne.s32.totalorder %s45, %s46
      %p60 = scmp.eq.s32.totalorder %s24, 1
      %p61 = por %p59, %p60
      %p63 = scmp.ne.s32.totalorder %s46, %s62
      %p64 = scmp.eq.s32.totalorder %s24, 0
      %p65 = por %p63, %p64
      %s66 = ssub.s32 %s25, %s37
      %p67 = scmp.eq.s32.totalorder %s66, 0
      %s69 = sadd.s32 %s68, 1
      %s70 = scalar_select %p67, %s68, %s69
      %p73 = pneg %p67
      %p74 = scmp.eq.s32.totalorder %s18, 1
      %p75 = por %p73, %p74
      %p76 = scmp.ne.s32.totalorder %s68, %s71
      %p77 = scmp.eq.s32.totalorder %s18, 0
      %p78 = por %p76, %p77
      %p79 = scmp.ne.s32.totalorder %s68, %s71
      %p80 = scmp.eq.s32.totalorder %s23, 1
      %p81 = por %p79, %p80
      %p82 = scmp.ne.s32.totalorder %s71, %s72
      %p83 = scmp.eq.s32.totalorder %s23, 0
      %p84 = por %p82, %p83
      %p85 = scmp.ne.s32.totalorder %s71, %s72
      %p86 = scmp.eq.s32.totalorder %s24, 1
      %p87 = por %p85, %p86
      %p89 = scmp.ne.s32.totalorder %s72, %s88
      %p90 = scmp.eq.s32.totalorder %s24, 0
      %p91 = por %p89, %p90
      %s93 = sadd.s32 %s92, 1
      %p96 = scmp.eq.s32.totalorder %s18, 1
      %p97 = scmp.ne.s32.totalorder %s92, %s94
      %p98 = scmp.eq.s32.totalorder %s18, 0
      %p99 = por %p97, %p98
      %p100 = scmp.ne.s32.totalorder %s92, %s94
      %p101 = scmp.eq.s32.totalorder %s23, 1
      %p102 = por %p100, %p101
      %p103 = scmp.ne.s32.totalorder %s94, %s95
      %p104 = scmp.eq.s32.totalorder %s23, 0
      %p105 = por %p103, %p104
      %p106 = scmp.ne.s32.totalorder %s94, %s95
      %p107 = scmp.eq.s32.totalorder %s24, 1
      %p108 = por %p106, %p107
      %p110 = scmp.ne.s32.totalorder %s95, %s109
      %p111 = scmp.eq.s32.totalorder %s24, 0
      %p112 = por %p110, %p111
      %s114 = sadd.s32 %s113, 1
      %p117 = scmp.eq.s32.totalorder %s18, 1
      %p118 = scmp.ne.s32.totalorder %s113, %s115
      %p119 = scmp.eq.s32.totalorder %s18, 0
      %p120 = por %p118, %p119
      %p121 = scmp.ne.s32.totalorder %s113, %s115
      %p122 = scmp.eq.s32.totalorder %s23, 1
      %p123 = por %p121, %p122
      %p124 = scmp.ne.s32.totalorder %s115, %s116
      %p125 = scmp.eq.s32.totalorder %s23, 0
      %p126 = por %p124, %p125
      %p127 = scmp.ne.s32.totalorder %s115, %s116
      %p128 = scmp.eq.s32.totalorder %s24, 1
      %p129 = por %p127, %p128
      %p131 = scmp.ne.s32.totalorder %s116, %s130
      %p132 = scmp.eq.s32.totalorder %s24, 0
      %p133 = por %p131, %p132
      %s134 = ssub.s32 %s25, %s37
      %s135 = ssub.s32 %s26, %s33
      %s136 = sor.u32 %s134, %s135
      %p137 = scmp.eq.s32.totalorder %s136, 0
      %s139 = sadd.s32 %s138, 1
      %s140 = scalar_select %p137, %s138, %s139
      %p143 = pneg %p137
      %p144 = scmp.eq.s32.totalorder %s18, 1
      %p145 = por %p143, %p144
      %p146 = scmp.ne.s32.totalorder %s138, %s141
      %p147 = scmp.eq.s32.totalorder %s18, 0
      %p148 = por %p146, %p147
      %p149 = scmp.ne.s32.totalorder %s138, %s141
      %p150 = scmp.eq.s32.totalorder %s23, 1
      %p151 = por %p149, %p150
      %p152 = scmp.ne.s32.totalorder %s141, %s142
      %p153 = scmp.eq.s32.totalorder %s23, 0
      %p154 = por %p152, %p153
      %p155 = scmp.ne.s32.totalorder %s141, %s142
      %p156 = scmp.eq.s32.totalorder %s24, 1
      %p157 = por %p155, %p156
      %p159 = scmp.ne.s32.totalorder %s142, %s158
      %p160 = scmp.eq.s32.totalorder %s24, 0
      %p161 = por %p159, %p160
      %s162 = ssub.s32 %s25, %s37
      %s163 = ssub.s32 %s26, %s33
      %s164 = sor.u32 %s162, %s163
      %p165 = scmp.eq.s32.totalorder %s164, 0
      %s167 = sadd.s32 %s166, 1
      %s168 = scalar_select %p165, %s166, %s167
      %p171 = pneg %p165
      %p172 = scmp.eq.s32.totalorder %s18, 1
      %p173 = por %p171, %p172
      %p174 = scmp.ne.s32.totalorder %s166, %s169
      %p175 = scmp.eq.s32.totalorder %s18, 0
      %p176 = por %p174, %p175
      %p177 = scmp.ne.s32.totalorder %s166, %s169
      %p178 = scmp.eq.s32.totalorder %s23, 1
      %p179 = por %p177, %p178
      %p180 = scmp.ne.s32.totalorder %s169, %s170
      %p181 = scmp.eq.s32.totalorder %s23, 0
      %p182 = por %p180, %p181
      %p183 = scmp.ne.s32.totalorder %s169, %s170
      %p184 = scmp.eq.s32.totalorder %s24, 1
      %p185 = por %p183, %p184
      %p187 = scmp.ne.s32.totalorder %s170, %s186
      %p188 = scmp.eq.s32.totalorder %s24, 0
      %p189 = por %p187, %p188
      %p190 = scmp.le.s32.totalorder 1, %s18
      %p191 = scmp.lt.s32.totalorder %s18, 3
      %p192 = pnand %p190, %p191
      %p193 = pneg %p192
      // Predicated region
      $region9: #{tpu_custom_call.1} parent=5 // pred_check
        _
      $region10: #{tpu_custom_call.1} parent=5 // pred_check_branch
        %195 = sbr.rel (%p192) target = $region12
      $region11: #{tpu_custom_call.1} parent=5 // pred_region
        %s196 = ssub.s32 %s18, 1
        // Predicated region
        $region13: #{tpu_custom_call.1} parent=11 // pred_check
          %p197 = pneg %p105
        $region14: #{tpu_custom_call.1} parent=11 // pred_check_branch
          %199 = sbr.rel (%p197) target = $region16
        $region15: #{tpu_custom_call.1} parent=11 // pred_region
          _
        $region16: #{tpu_custom_call.1} parent=11 // pred_fallthru
          _
        // Predicated region
        $region17: #{tpu_custom_call.1} parent=11 // pred_check
          %p200 = pneg %p126
        $region18: #{tpu_custom_call.1} parent=11 // pred_check_branch
          %202 = sbr.rel (%p200) target = $region20
        $region19: #{tpu_custom_call.1} parent=11 // pred_region
          _
        $region20: #{tpu_custom_call.1} parent=11 // pred_fallthru
          _
      $region12: #{tpu_custom_call.1} parent=5 // pred_fallthru
        _
      %p203 = scmp.lt.s32.totalorder %s18, 2
      // Predicated region
      $region21: #{tpu_custom_call.1} parent=5 // pred_check
        %p204 = pneg %p203
      $region22: #{tpu_custom_call.1} parent=5 // pred_check_branch
        %206 = sbr.rel (%p204) target = $region24
      $region23: #{tpu_custom_call.1} parent=5 // pred_region
        // Predicated region
        $region25: #{tpu_custom_call.1} parent=23 // pred_check
          %p207 = pneg %p52
        $region26: #{tpu_custom_call.1} parent=23 // pred_check_branch
          %209 = sbr.rel (%p207) target = $region28
        $region27: #{tpu_custom_call.1} parent=23 // pred_region
          %p210 = scmp.lt.s32.totalorder %s25, 1
          %s211 = scalar_select %p210, %s25, 1
          %p212 = scmp.lt.s32.totalorder %s26, 0
          %s213 = scalar_select %p212, %s26, 0
          %s214 = sadd.s32 %s213, %s211
          %s215 = smul.addr %s214, 8
          %s216 = scalar_lea.vmem %s0, %s215
        $region28: #{tpu_custom_call.1} parent=23 // pred_fallthru
          _
        // Predicated region
        $region29: #{tpu_custom_call.1} parent=23 // pred_check
          %p217 = pneg %p78
        $region30: #{tpu_custom_call.1} parent=23 // pred_check_branch
          %219 = sbr.rel (%p217) target = $region32
        $region31: #{tpu_custom_call.1} parent=23 // pred_region
          %p220 = scmp.lt.s32.totalorder %s25, 1
          %s221 = scalar_select %p220, %s25, 1
          %s222 = smul.addr %s221, 8
          %s223 = scalar_lea.vmem %s1, %s222
        $region32: #{tpu_custom_call.1} parent=23 // pred_fallthru
          _
      $region24: #{tpu_custom_call.1} parent=5 // pred_fallthru
        _
      %p224 = scmp.le.s32.totalorder 1, %s18
      %p225 = scmp.lt.s32.totalorder %s18, 3
      %p226 = pnand %p224, %p225
      %p227 = pneg %p226
      // Predicated region
      $region33: #{tpu_custom_call.1} parent=5 // pred_check
        _
      $region34: #{tpu_custom_call.1} parent=5 // pred_check_branch
        %229 = sbr.rel (%p226) target = $region36
      $region35: #{tpu_custom_call.1} parent=5 // pred_region
        %s230 = ssub.s32 %s18, 1
        %p231 = scmp.lt.s32.totalorder %s27, 1
        %s232 = scalar_select %p231, %s27, 1
        %p233 = scmp.lt.s32.totalorder %s28, 0
        %s234 = scalar_select %p233, %s28, 0
        %s235 = sadd.s32 %s234, %s232
        %s236 = smul.addr %s235, 8
        %s237 = scalar_lea.vmem %s0, %s236
        %p238 = pneg %p58
        %p239 = pneg %p55
        %p240 = scmp.lt.s32.totalorder %s27, 1
        %s241 = scalar_select %p240, %s27, 1
        %s242 = smul.addr %s241, 8
        %s243 = scalar_lea.vmem %s1, %s242
        %p244 = pneg %p84
        %p245 = pneg %p81
        %p246 = pneg %p105
        %p247 = pneg %p102
        %p248 = pneg %p126
        %p249 = pneg %p123
        %p250 = pneg %p154
        %p251 = pneg %p151
        %s252 = sand.u32 %s141, 1
        %s253 = scalar_lea.sflag [#allocation3], %s252
        %s254 = sand.u32 %s141, 1
        %s255 = smul.addr %s254, 8
        %s256 = scalar_lea.vmem [#allocation2], %s255
        %p257 = pneg %p182
        %p258 = pneg %p179
        %s259 = sand.u32 %s169, 1
        %s260 = scalar_lea.sflag [#allocation5], %s259
        %s261 = sand.u32 %s169, 1
        %s262 = smul.addr %s261, 8
        %s263 = scalar_lea.vmem [#allocation4], %s262
        %p264 = scmp.lt.s32.totalorder %s27, 1
        %s265 = scalar_select %p264, %s27, 1
        %p266 = scmp.lt.s32.totalorder %s28, 0
        %s267 = scalar_select %p266, %s28, 0
        %s268 = sadd.s32 %s267, %s265
        %s269 = smul.addr %s268, 8
        %s270 = scalar_lea.vmem %s0, %s269
        %p271 = scmp.lt.s32.totalorder %s27, 1
        %s272 = scalar_select %p271, %s27, 1
        %s273 = smul.addr %s272, 8
        %s274 = scalar_lea.vmem %s1, %s273
        %v275 = vld [vmem:[%s270] sm:$0xff]
        %v276 = vld [vmem:[%s274] sm:$0xff]
        %vm277 = vcmask 261120
        %v279 = vsel %vm277, %v275, 0
        %v282 = vsel %vm277, %v276, 0
        %284 = vmatpush.xpose.msra.mxu0 0.0
        %285 = vmatpush.xpose.msra.mxu0 0.0
        %286 = vmatpush.xpose.msra.mxu0 0.0
        %287 = vmatpush.xpose.msra.mxu0 0.0
        %288 = vmatpush.xpose.msra.mxu0 0.0
        %289 = vmatpush.xpose.msra.mxu0 0.0
        %290 = vmatpush.xpose.msra.mxu0 0.0
        %291 = vmatpush.xpose.msra.mxu0 0.0
        %292 = vmatpush.xpose.msra.mxu0 0.0
        %293 = vmatpush.xpose.msra.mxu0 0.0
        %294 = vmatpush.xpose.msra.mxu0 0.0
        %295 = vmatpush.xpose.msra.mxu0 0.0
        %296 = vmatpush.xpose.msra.mxu0 0.0
        %297 = vmatpush.xpose.msra.mxu0 0.0
        %298 = vmatpush.xpose.msra.mxu0 0.0
        %299 = vmatpush.xpose.msra.mxu0 %v282
        %300 = vmatmul.f32.gmra.mxu0 %v279
        %v301 = vpop.f32.mrf.mxu0
        %v302 = vadd.f32 0.0, %v301
        %303 = vdwg.mxu0
        %vm304 = vcmask 64512
        %v305 = vsel %vm304, %v302, -inf
        %306 = vmax.xlane.f32.xlu0 %v305
        %v307 = vpop.xlane.xlu0 %306
        %v308 = vsub.f32 %v302, %v307
        %v309 = vmul.f32 %v308, 1.442695
        %v310 = vpow.pop %v309
        %v311 = vsel %vm304, %v310, 0.0
        %312 = vadd.xlane.f32.xlu0 %v311
        %v313 = vpop.xlane.xlu0 %312
        %v314 = vrcp.pop %v313
        %v315 = vmul.f32 %v313, %v314
        %v316 = vsub.f32 2.0, %v315
        %v317 = vmul.f32 %v314, %v316
        %v318 = vmul.f32 %v310, %v317
        %v320 = vsel %vm304, %v318, 0
        %322 = vmatpush.msra.mxu0 0.0
        %323 = vmatpush.msra.mxu0 0.0
        %324 = vmatpush.msra.mxu0 0.0
        %325 = vmatpush.msra.mxu0 0.0
        %326 = vmatpush.msra.mxu0 0.0
        %327 = vmatpush.msra.mxu0 0.0
        %328 = vmatpush.msra.mxu0 0.0
        %329 = vmatpush.msra.mxu0 0.0
        %330 = vmatpush.msra.mxu0 0.0
        %331 = vmatpush.msra.mxu0 0.0
        %332 = vmatpush.msra.mxu0 0.0
        %333 = vmatpush.msra.mxu0 0.0
        %334 = vmatpush.msra.mxu0 0.0
        %335 = vmatpush.msra.mxu0 0.0
        %336 = vmatpush.msra.mxu0 0.0
        %337 = vmatpush.msra.mxu0 %v276
        %338 = vmatmul.f32.gmra.mxu0 %v320
        %v339 = vpop.f32.mrf.mxu0
        %v340 = vadd.f32 0.0, %v339
        %341 = vdwg.mxu0
        %v342 = vld [vmem:[%s2] sm:$0xff]
        %v343 = vld [vmem:[%s2 + $0x8] sm:$0xff]
        %v344 = vld [vmem:[%s2 + $0x10] sm:$0xff]
        %v345 = vld [vmem:[%s2 + $0x18] sm:$0xff]
        %v346 = vld [vmem:[%s2 + $0x20] sm:$0xff]
        %v347 = vld [vmem:[%s2 + $0x28] sm:$0xff]
        %v348 = vld [vmem:[%s2 + $0x30] sm:$0xff]
        %v349 = vld [vmem:[%s2 + $0x38] sm:$0xff]
        %350 = vmatpush.msra.mxu0 0.0
        %351 = vmatpush.msra.mxu0 0.0
        %352 = vmatpush.msra.mxu0 0.0
        %353 = vmatpush.msra.mxu0 0.0
        %354 = vmatpush.msra.mxu0 0.0
        %355 = vmatpush.msra.mxu0 0.0
        %356 = vmatpush.msra.mxu0 0.0
        %357 = vmatpush.msra.mxu0 0.0
        %358 = vmatpush.msra.mxu0 0.0
        %359 = vmatpush.msra.mxu0 0.0
        %360 = vmatpush.msra.mxu0 0.0
        %361 = vmatpush.msra.mxu0 0.0
        %362 = vmatpush.msra.mxu0 %v349
        %363 = vmatpush.msra.mxu0 %v348
        %364 = vmatpush.msra.mxu0 %v347
        %365 = vmatpush.msra.mxu0 %v346
        %366 = vmatmul.f32.gmra.mxu0 %v279
        %v367 = vpop.f32.mrf.mxu0
        %v368 = vadd.f32 0.0, %v367
        %369 = vdwg.mxu0
        %v371 = vsel %vm277, %v340, 0
        %373 = vmatpush.msra.mxu0 0.0
        %374 = vmatpush.msra.mxu0 0.0
        %375 = vmatpush.msra.mxu0 0.0
        %376 = vmatpush.msra.mxu0 0.0
        %377 = vmatpush.msra.mxu0 0.0
        %378 = vmatpush.msra.mxu0 0.0
        %379 = vmatpush.msra.mxu0 0.0
        %380 = vmatpush.msra.mxu0 0.0
        %381 = vmatpush.msra.mxu0 0.0
        %382 = vmatpush.msra.mxu0 0.0
        %383 = vmatpush.msra.mxu0 0.0
        %384 = vmatpush.msra.mxu0 0.0
        %385 = vmatpush.msra.mxu0 %v345
        %386 = vmatpush.msra.mxu0 %v344
        %387 = vmatpush.msra.mxu0 %v343
        %388 = vmatpush.msra.mxu0 %v342
        %389 = vmatmul.f32.gmra.mxu0 %v371
        %v390 = vpop.f32.mrf.mxu0
        %v391 = vadd.f32 %v368, %v390
        %392 = vdwg.mxu0
        %v393 = vld [vmem:[%s3] sm:$0x1]
        %v395 = vperm.slane %v393, 0
        %v397 = vadd.f32 %v391, %v395
        %v398 = vtanh.pop %v397
        %399 = vst.msk [vmem:[%s256] sm:$0xff] %vm277, %v398
        %400 = vst.msk [vmem:[%s263] sm:$0xff] %vm304, %v318
        %s401 = sand.u32 %s141, 1
        %s402 = scalar_lea.sflag [#allocation3], %s401
        %s403 = sand.u32 %s141, 1
        %s404 = smul.addr %s403, 8
        %s405 = scalar_lea.vmem [#allocation2], %s404
        %s406 = sand.u32 %s169, 1
        %s407 = scalar_lea.sflag [#allocation5], %s406
        %s408 = sand.u32 %s169, 1
        %s409 = smul.addr %s408, 8
        %s410 = scalar_lea.vmem [#allocation4], %s409
        // Predicated region
        $region37: #{tpu_custom_call.1} parent=35 // pred_check
          %p411 = pneg %p151
        $region38: #{tpu_custom_call.1} parent=35 // pred_check_branch
          %413 = sbr.rel (%p411) target = $region40
        $region39: #{tpu_custom_call.1} parent=35 // pred_region
          %415 = vsyncadd %s402, 0
          %s416 = sadd.s32 %s28, %s27
          %s417 = smul.addr %s416, 8
          %s418 = scalar_lea.hbm %s4, %s417
          %s420 = sshll.u32 %s405, 4
          %s421 = int_to_ptr.vmem [resolvable:$true] %s420
          %s422 = sshll.u32 %s418, 4
          %s423 = int_to_ptr.hbm [resolvable:$true] %s422
          %425 = dma.vmem_to_hbm [thread:$0]  %s421, 128, %s423, %s402
        $region40: #{tpu_custom_call.1} parent=35 // pred_fallthru
          _
        // Predicated region
        $region41: #{tpu_custom_call.1} parent=35 // pred_check
          %p426 = pneg %p179
        $region42: #{tpu_custom_call.1} parent=35 // pred_check_branch
          %428 = sbr.rel (%p426) target = $region44
        $region43: #{tpu_custom_call.1} parent=35 // pred_region
          %430 = vsyncadd %s407, 0
          %s431 = sadd.s32 %s28, %s27
          %s432 = smul.addr %s431, 8
          %s433 = scalar_lea.hbm %s5, %s432
          %s435 = sshll.u32 %s410, 4
          %s436 = int_to_ptr.vmem [resolvable:$true] %s435
          %s437 = sshll.u32 %s433, 4
          %s438 = int_to_ptr.hbm [resolvable:$true] %s437
          %440 = dma.vmem_to_hbm [thread:$0]  %s436, 128, %s438, %s407
        $region44: #{tpu_custom_call.1} parent=35 // pred_fallthru
          _
      $region36: #{tpu_custom_call.1} parent=5 // pred_fallthru
        _
      %p441 = scmp.le.s32.totalorder 2, %s18
      // Predicated region
      $region45: #{tpu_custom_call.1} parent=5 // pred_check
        %p442 = pneg %p441
      $region46: #{tpu_custom_call.1} parent=5 // pred_check_branch
        %444 = sbr.rel (%p442) target = $region48
      $region47: #{tpu_custom_call.1} parent=5 // pred_region
        %s445 = ssub.s32 %s18, 2
        // Predicated region
        $region49: #{tpu_custom_call.1} parent=47 // pred_check
          %p446 = pneg %p157
        $region50: #{tpu_custom_call.1} parent=47 // pred_check_branch
          %448 = sbr.rel (%p446) target = $region52
        $region51: #{tpu_custom_call.1} parent=47 // pred_region
          %s449 = sand.u32 %s142, 1
          %s450 = scalar_lea.sflag [#allocation3], %s449
          %s451 = sand.u32 %s142, 1
          %s452 = smul.addr %s451, 8
          %s453 = scalar_lea.vmem [#allocation2], %s452
          %455 = dma.done %s450, 128
        $region52: #{tpu_custom_call.1} parent=47 // pred_fallthru
          _
        // Predicated region
        $region53: #{tpu_custom_call.1} parent=47 // pred_check
          %p456 = pneg %p185
        $region54: #{tpu_custom_call.1} parent=47 // pred_check_branch
          %458 = sbr.rel (%p456) target = $region56
        $region55: #{tpu_custom_call.1} parent=47 // pred_region
          %s459 = sand.u32 %s170, 1
          %s460 = scalar_lea.sflag [#allocation5], %s459
          %s461 = sand.u32 %s170, 1
          %s462 = smul.addr %s461, 8
          %s463 = scalar_lea.vmem [#allocation4], %s462
          %465 = dma.done %s460, 128
        $region56: #{tpu_custom_call.1} parent=47 // pred_fallthru
          _
      $region48: #{tpu_custom_call.1} parent=5 // pred_fallthru
        _
    $region6: #{tpu_custom_call.1} parent=1 // loop_footer
      %s22 = sadd.s32 1, %s18
    $region7: #{tpu_custom_call.1} parent=1 // loop_footer_branch
      %17 = sbr.rel target = $region3
    $region8: #{tpu_custom_call.1} parent=1 // loop_exit
      _
    %466 = vsyncpa [#allocation3], 1
    %s467 = scalar_lea.sflag [#allocation3], 1
    %468 = vsyncpa %s467, 1
    %469 = vsyncpa [#allocation5], 1
    %s470 = scalar_lea.sflag [#allocation5], 1
    %471 = vsyncpa %s470, 1

</llo_original>
